<compile_context>
chip_gen: v5e
topology: v5e:2x2
jax: 0.10.0
libtpu: 0.0.40
codegen_flags: <defaults>
</compile_context>

<pallas_src>
import functools

import jax
import jax.numpy as jnp
from jax import lax, random
from jax.experimental import pallas as pl
from jax.experimental.pallas import tpu as pltpu


# --------------------------------------------------------------------------
# Per-generation VMEM budget
# --------------------------------------------------------------------------
@functools.lru_cache(maxsize=None)
def _vmem_limit_bytes():
    # v5e/v6e: 128 MiB physical VMEM, v7x: 64 MiB.
    try:
        cap = pltpu.get_tpu_info().vmem_capacity_bytes
    except Exception:
        cap = 64 << 20
    return int(min(100 << 20, cap * 7 // 8))


def _compiler_params(dimension_semantics):
    return pltpu.CompilerParams(
        dimension_semantics=dimension_semantics,
        vmem_limit_bytes=_vmem_limit_bytes(),
    )


# --------------------------------------------------------------------------
# Row-tile selection: largest divisor of H (even if pooling is fused) whose
# per-step footprint (xpad + flattened-window value + f32 accumulator +
# double-buffered output block) stays under a few MiB.
# --------------------------------------------------------------------------
def _pick_tile_rows(H, W, Cin, Cout, fuse_pool, max_tile_rows=None,
                    budget_bytes=6 << 20):
    Wp = W + 2

    def footprint(th):
        xpad = (th + 3) * Wp * Cin * 2                 # bf16 scratch
        acc = th * Wp * Cout * 4                       # f32 accumulator value
        tho = th // 2 if fuse_pool else th
        out = tho * W * Cout * 2 * 2                   # bf16 out block, dbuf
        return 2 * xpad + acc + out                    # xflat value ~ xpad

    cands = [th for th in range(H, 0, -1)
             if H % th == 0 and not (fuse_pool and th % 2)]
    if max_tile_rows is not None:
        capped = [th for th in cands if th <= max_tile_rows]
        cands = capped or cands
    for th in cands:
        if footprint(th) <= budget_bytes:
            return th
    return cands[-1]


# --------------------------------------------------------------------------
# 3x3 conv + bias + ReLU (+ optional fused 2x2/s2 max-pool), H-tiled with a
# 1-row halo.  Input stays in HBM and is DMA'd straight into the padded
# scratch; the 9 taps are contiguous offset windows of the flattened tile.
# --------------------------------------------------------------------------
def _conv3x3_kernel(x_hbm, w_ref, b_ref, o_ref, xpad_ref, sem, *,
                    H, W, Cin, TH, fuse_pool):
    # x_hbm:    (N, H, W, Cin) bf16, full array left in HBM (pl.ANY).
    # w_ref:    (9, Cin, Cout) bf16   -- constant block index -> resident.
    # b_ref:    (1, Cout) f32
    # o_ref:    (1, THo, Wo, Cout) bf16
    # xpad_ref: (TH+3, W+2, Cin) bf16 SAME-padded row tile (borders zeroed).
    # sem:      DMA semaphores (3,): main rows, top halo, bottom halo.
    n = pl.program_id(0)
    h = pl.program_id(1)
    n_h = pl.num_programs(1)
    Wp = W + 2
    Cout = o_ref.shape[-1]
    row0 = h * TH

    def main_copy():
        return pltpu.make_async_copy(
            x_hbm.at[n, pl.ds(row0, TH)],
            xpad_ref.at[pl.ds(1, TH), pl.ds(1, W)],
            sem.at[0])

    def top_copy():
        return pltpu.make_async_copy(
            x_hbm.at[n, pl.ds(row0 - 1, 1)],
            xpad_ref.at[pl.ds(0, 1), pl.ds(1, W)],
            sem.at[1])

    def bot_copy():
        return pltpu.make_async_copy(
            x_hbm.at[n, pl.ds(row0 + TH, 1)],
            xpad_ref.at[pl.ds(TH + 1, 1), pl.ds(1, W)],
            sem.at[2])

    # Kick off the interior + halo DMAs first so the border zeroing (VPU
    # stores, disjoint addresses) overlaps them.
    main_copy().start()

    @pl.when(h > 0)
    def _():
        top_copy().start()

    @pl.when(h < n_h - 1)
    def _():
        bot_copy().start()

    # Zero ONLY the 1-wide borders (never touched by the DMAs above); the old
    # full-buffer zero fill nearly doubled prep store traffic.
    zero_row = jnp.zeros((1, Wp, Cin), jnp.bfloat16)
    zero_col = jnp.zeros((TH + 3, 1, Cin), jnp.bfloat16)
    xpad_ref[:, 0:1, :] = zero_col                      # left pad column
    xpad_ref[:, W + 1:W + 2, :] = zero_col              # right pad column
    xpad_ref[TH + 2:TH + 3, :, :] = zero_row            # wrap row (cropped)

    @pl.when(h == 0)
    def _():
        xpad_ref[0:1, :, :] = zero_row                  # top image pad

    @pl.when(h == n_h - 1)
    def _():
        xpad_ref[TH + 1:TH + 2, :, :] = zero_row        # bottom image pad

    main_copy().wait()

    @pl.when(h > 0)
    def _():
        top_copy().wait()

    @pl.when(h < n_h - 1)
    def _():
        bot_copy().wait()

    # 9 accumulated K=Cin matmuls on contiguous offset windows of the
    # flattened padded tile (no 9x-duplicated cols scratch, no boundary-
    # crossing slice copies).  f32 accumulation on the MXU output.
    M = TH * Wp
    xflat = xpad_ref[...].reshape((TH + 3) * Wp, Cin)
    acc = jnp.zeros((M, Cout), jnp.float32)
    for dy in range(3):
        for dx in range(3):
            off = dy * Wp + dx
            win = xflat[off:off + M, :]
            acc = acc + jnp.dot(win, w_ref[dy * 3 + dx],
                                preferred_element_type=jnp.float32)
    acc = jnp.maximum(acc + b_ref[...], 0.0)
    y = acc.reshape(TH, Wp, Cout)[:, :W, :]             # crop padded columns

    if fuse_pool:
        # Fused 2x2 / stride-2 max pool on the f32 result (saves an HBM
        # round trip of the pre-pool activation).
        THo, Wo = TH // 2, W // 2
        a = y.reshape(THo, 2, W, Cout)
        hmax = jnp.maximum(a[:, 0], a[:, 1])            # pool along H
        pw = hmax.reshape(THo, Wo, 2, Cout)
        y = jnp.maximum(pw[:, :, 0, :], pw[:, :, 1, :])  # pool along W

    o_ref[...] = y[None].astype(o_ref.dtype)


def conv3x3_relu(x, w, b, *, fuse_pool=False, max_tile_rows=None):
    """3x3 SAME conv + bias + ReLU (+ optional fused 2x2/s2 max pool).

    x: (N,H,W,Cin) NHWC, w: (3,3,Cin,Cout) HWIO f32, b: (Cout,) f32.
    Returns bf16 NHWC (pooled shape if fuse_pool).
    """
    N, H, W, Cin = x.shape
    Cout = w.shape[-1]
    if fuse_pool:
        assert H % 2 == 0 and W % 2 == 0, "fused max-pool requires even H, W"

    TH = _pick_tile_rows(H, W, Cin, Cout, fuse_pool, max_tile_rows)
    n_h = H // TH
    THo = TH // 2 if fuse_pool else TH
    Ho, Wo = (H // 2, W // 2) if fuse_pool else (H, W)

    x = x.astype(jnp.bfloat16)
    wk = w.reshape(9, Cin, Cout).astype(jnp.bfloat16)
    b2 = b.reshape(1, Cout).astype(jnp.float32)

    kernel = functools.partial(_conv3x3_kernel, H=H, W=W, Cin=Cin, TH=TH,
                               fuse_pool=fuse_pool)
    return pl.pallas_call(
        kernel,
        out_shape=jax.ShapeDtypeStruct((N, Ho, Wo, Cout), jnp.bfloat16),
        grid_spec=pltpu.PrefetchScalarGridSpec(
            num_scalar_prefetch=0,
            grid=(N, n_h),
            in_specs=[
                pl.BlockSpec(memory_space=pl.ANY),                 # x in HBM
                pl.BlockSpec((9, Cin, Cout), lambda n, h: (0, 0, 0)),
                pl.BlockSpec((1, Cout), lambda n, h: (0, 0)),
            ],
            out_specs=pl.BlockSpec((1, THo, Wo, Cout),
                                   lambda n, h: (n, h, 0, 0)),
            scratch_shapes=[
                pltpu.VMEM((TH + 3, W + 2, Cin), jnp.bfloat16),
                pltpu.SemaphoreType.DMA((3,)),
            ],
        ),
        compiler_params=_compiler_params(("parallel", "parallel")),
    )(x, wk, b2)


# --------------------------------------------------------------------------
# First conv (Cin=3): wrapper-side im2col -> one K=27(->32) matmul, M-tiled.
# --------------------------------------------------------------------------
def _im2col_matmul_kernel(x_ref, w_ref, b_ref, o_ref):
    # x_ref: (1, TM, Kp) bf16, w_ref: (Kp, Cout) bf16, b_ref: (1, Cout) f32
    acc = jnp.dot(x_ref[0], w_ref[...], preferred_element_type=jnp.float32)
    acc = jnp.maximum(acc + b_ref[...], 0.0)
    o_ref[...] = acc[None].astype(o_ref.dtype)


def _largest_divisor(n, cap, mult=8):
    for d in range(min(n, cap), 0, -1):
        if n % d == 0 and (d % mult == 0 or d == n):
            return d
    return n


def conv3x3_relu_im2col(x, w, b, *, m_tile=4096):
    """First conv: Cin=3 wastes the lane axis / MXU depth, so build the K=27
    im2col matrix (padded to 32) in the wrapper and do a single matmul."""
    N, H, W, Cin = x.shape
    Cout = w.shape[-1]
    K = 9 * Cin
    Kp = ((K + 31) // 32) * 32
    M = H * W
    TM = _largest_divisor(M, m_tile)
    n_m = M // TM

    xp = jnp.pad(x, ((0, 0), (1, 1), (1, 1), (0, 0)))
    patches = jnp.concatenate(
        [xp[:, dy:dy + H, dx:dx + W, :] for dy in range(3) for dx in range(3)],
        axis=-1)                                           # (N, H, W, 9*Cin)
    cols = jnp.pad(patches, ((0, 0), (0, 0), (0, 0), (0, Kp - K)))
    cols = cols.astype(jnp.bfloat16).reshape(N, M, Kp)
    wk = jnp.pad(w.reshape(K, Cout), ((0, Kp - K), (0, 0))).astype(jnp.bfloat16)
    b2 = b.reshape(1, Cout).astype(jnp.float32)

    out = pl.pallas_call(
        _im2col_matmul_kernel,
        out_shape=jax.ShapeDtypeStruct((N, M, Cout), jnp.bfloat16),
        grid_spec=pltpu.PrefetchScalarGridSpec(
            num_scalar_prefetch=0,
            grid=(N, n_m),
            in_specs=[
                pl.BlockSpec((1, TM, Kp), lambda n, m: (n, m, 0)),
                pl.BlockSpec((Kp, Cout), lambda n, m: (0, 0)),
                pl.BlockSpec((1, Cout), lambda n, m: (0, 0)),
            ],
            out_specs=pl.BlockSpec((1, TM, Cout), lambda n, m: (n, m, 0)),
        ),
        compiler_params=_compiler_params(("parallel", "parallel")),
    )(cols, wk, b2)
    return out.reshape(N, H, W, Cout)


# --------------------------------------------------------------------------
# VGG19 features[:30] split as in the PyTorch module:
#   f1 = [0:2), f2 = [2:7), f3 = [7:12), f4 = [12:21), f5 = [21:30)
# Each entry: (cin, cout, fuse_pool) -- MaxPool layers are fused into the conv
# that immediately precedes them.
# --------------------------------------------------------------------------
VGG_STAGES = [
    [(3, 64, False)],                                                  # f1
    [(64, 64, True), (64, 128, False)],                                # f2
    [(128, 128, True), (128, 256, False)],                             # f3
    [(256, 256, False), (256, 256, False), (256, 256, True),
     (256, 512, False)],                                               # f4
    [(512, 512, False), (512, 512, False), (512, 512, True),
     (512, 512, False)],                                               # f5
]


def init_params(key):
    """Deterministic synthetic weights (He init); no checkpoint loading."""
    params = []
    i = 0
    for stage in VGG_STAGES:
        for cin, cout, _ in stage:
            kw, kb = random.split(random.fold_in(key, i))
            w = random.normal(kw, (3, 3, cin, cout), jnp.float32)
            w = w * jnp.sqrt(2.0 / (9.0 * cin))
            b = 0.01 * random.normal(kb, (cout,), jnp.float32)
            params.append((w, b))
            i += 1
    return params


def vgg19_features(x_nchw, params, *, max_tile_rows=None):
    """Forward pass. Returns [h1..h5], each NCHW f32 (PyTorch convention)."""
    x = jnp.transpose(x_nchw, (0, 2, 3, 1))   # NCHW -> NHWC for the kernels
    outs = []
    pi = 0
    for stage in VGG_STAGES:
        for cin, cout, fuse_pool in stage:
            w, b = params[pi]
            pi += 1
            if cin == 3:
                x = conv3x3_relu_im2col(x, w, b)
            else:
                x = conv3x3_relu(x, w, b, fuse_pool=fuse_pool,
                                 max_tile_rows=max_tile_rows)
        outs.append(jnp.transpose(x, (0, 3, 1, 2)).astype(jnp.float32))
    return outs


# --------------------------------------------------------------------------
# Pure-JAX reference with matching bf16-in / f32-accumulate numerics
# --------------------------------------------------------------------------
def _layer_ref(x, w, b, fuse_pool):
    y = lax.conv_general_dilated(
        x.astype(jnp.bfloat16), w.astype(jnp.bfloat16),
        window_strides=(1, 1), padding="SAME",
        dimension_numbers=("NHWC", "HWIO", "NHWC"),
        preferred_element_type=jnp.float32)
    y = jnp.maximum(y + b.astype(jnp.float32), 0.0)
    if fuse_pool:
        y = lax.reduce_window(y, -jnp.inf, lax.max,
                              (1, 2, 2, 1), (1, 2, 2, 1), "VALID")
    return y.astype(jnp.bfloat16)


def vgg19_features_ref(x_nchw, params):
    x = jnp.transpose(x_nchw, (0, 2, 3, 1))
    outs = []
    pi = 0
    for stage in VGG_STAGES:
        for cin, cout, fuse_pool in stage:
            w, b = params[pi]
            pi += 1
            x = _layer_ref(x, w, b, fuse_pool)
        outs.append(jnp.transpose(x, (0, 3, 1, 2)).astype(jnp.float32))
    return outs


# --------------------------------------------------------------------------
if __name__ == "__main__":
    key = random.PRNGKey(0)
    kp, kx = random.split(key)
    params = init_params(kp)

    # Small input consistent with the module: RGB images, NCHW.
    x = random.normal(kx, (2, 3, 16, 16), jnp.float32)

    refs = jax.block_until_ready(vgg19_features_ref(x, params))
    expected_shapes = [(2, 64, 16, 16), (2, 128, 8, 8), (2, 256, 4, 4),
                       (2, 512, 2, 2), (2, 512, 1, 1)]

    # Default tiling (whole-image row tiles at these tiny shapes) ...
    outs = jax.block_until_ready(vgg19_features(x, params))
    # ... and a forced 4-row tiling so the halo-DMA path is exercised too.
    outs_tiled = jax.block_until_ready(
        vgg19_features(x, params, max_tile_rows=4))

    for o, ot, r, s in zip(outs, outs_tiled, refs, expected_shapes):
        assert o.shape == s, (o.shape, s)
        assert ot.shape == s, (ot.shape, s)
        assert bool(jnp.all(jnp.isfinite(o)))
        assert bool(jnp.all(jnp.isfinite(ot)))
        err = float(jnp.max(jnp.abs(o - r)))
        assert jnp.allclose(o, r, rtol=3e-2, atol=3e-2), err
        err_t = float(jnp.max(jnp.abs(ot - r)))
        assert jnp.allclose(ot, r, rtol=3e-2, atol=3e-2), err_t

    print("KERNEL_OK")
</pallas_src>

<mosaic_0001>
module attributes {stable_mosaic.version = 11 : i64} {
  func.func @_im2col_matmul_kernel(%arg0: i32, %arg1: i32, %arg2: memref<1x256x32xbf16, #tpu.memory_space<vmem>>, %arg3: memref<32x64xbf16, #tpu.memory_space<vmem>>, %arg4: memref<1x64xf32, #tpu.memory_space<vmem>>, %arg5: memref<1x256x64xbf16, #tpu.memory_space<vmem>>) attributes {dimension_semantics = [#tpu.dimension_semantics<parallel>, #tpu.dimension_semantics<parallel>], iteration_bounds = array<i64: 2, 1>, scalar_prefetch = 0 : i64, scratch_operands = 0 : i64, tpu.core_type = #tpu.core_type<tc>, window_params = [{transform_indices = @transform_0, window_bounds = array<i64: 1, 256, 32>}, {pipeline_mode = #tpu.pipeline_mode<synchronous>, transform_indices = @transform_1, window_bounds = array<i64: 32, 64>}, {pipeline_mode = #tpu.pipeline_mode<synchronous>, transform_indices = @transform_2, window_bounds = array<i64: 1, 64>}, {transform_indices = @transform_3, window_bounds = array<i64: 1, 256, 64>}]} {
    %c0 = arith.constant 0 : index
    %c0_0 = arith.constant 0 : index
    %c0_1 = arith.constant 0 : index
    %0 = vector.load %arg2[%c0, %c0_0, %c0_1] : memref<1x256x32xbf16, #tpu.memory_space<vmem>>, vector<1x256x32xbf16>
    %1 = vector.shape_cast %0 : vector<1x256x32xbf16> to vector<256x32xbf16>
    %c0_2 = arith.constant 0 : index
    %c0_3 = arith.constant 0 : index
    %2 = vector.load %arg3[%c0_2, %c0_3] : memref<32x64xbf16, #tpu.memory_space<vmem>>, vector<32x64xbf16>
    %cst = arith.constant dense<0.000000e+00> : vector<256x64xf32>
    %3 = tpu.matmul %1, %2, %cst {dimension_numbers = #tpu.dot_dimension_numbers<[1], [0], [0], [1], [0, 0, 1, 1], [], []>} : vector<256x32xbf16>, vector<32x64xbf16>, vector<256x64xf32> -> vector<256x64xf32>
    %c0_4 = arith.constant 0 : index
    %c0_5 = arith.constant 0 : index
    %4 = vector.load %arg4[%c0_4, %c0_5] : memref<1x64xf32, #tpu.memory_space<vmem>>, vector<1x64xf32>
    %5 = vector.broadcast %4 : vector<1x64xf32> to vector<256x64xf32>
    %6 = arith.addf %3, %5 : vector<256x64xf32>
    %cst_6 = arith.constant 0.000000e+00 : f32
    %7 = vector.broadcast %cst_6 : f32 to vector<256x64xf32>
    %8 = arith.maximumf %6, %7 : vector<256x64xf32>
    %9 = vector.shape_cast %8 : vector<256x64xf32> to vector<1x256x64xf32>
    %10 = arith.truncf %9 : vector<1x256x64xf32> to vector<1x256x64xbf16>
    %c0_7 = arith.constant 0 : index
    %c0_8 = arith.constant 0 : index
    %c0_9 = arith.constant 0 : index
    %11 = vector.load %arg5[%c0_7, %c0_8, %c0_9] : memref<1x256x64xbf16, #tpu.memory_space<vmem>>, vector<1x256x64xbf16>
    tpu.vector_store %arg5[%c0_7, %c0_8, %c0_9], %10 {strides = array<i32>} : memref<1x256x64xbf16, #tpu.memory_space<vmem>>, vector<1x256x64xbf16>,
    return
  }
  func.func @transform_0(%arg0: i32, %arg1: i32) -> (i32, i32, i32) {
    %c0_i32 = arith.constant 0 : i32
    %c0_i32_0 = arith.constant 0 : i32
    return %arg0, %arg1, %c0_i32 : i32, i32, i32
  }
  func.func @transform_1(%arg0: i32, %arg1: i32) -> (i32, i32) {
    %c0_i32 = arith.constant 0 : i32
    %c0_i32_0 = arith.constant 0 : i32
    %c0_i32_1 = arith.constant 0 : i32
    return %c0_i32, %c0_i32_0 : i32, i32
  }
  func.func @transform_2(%arg0: i32, %arg1: i32) -> (i32, i32) {
    %c0_i32 = arith.constant 0 : i32
    %c0_i32_0 = arith.constant 0 : i32
    %c0_i32_1 = arith.constant 0 : i32
    return %c0_i32, %c0_i32_0 : i32, i32
  }
  func.func @transform_3(%arg0: i32, %arg1: i32) -> (i32, i32, i32) {
    %c0_i32 = arith.constant 0 : i32
    %c0_i32_0 = arith.constant 0 : i32
    return %arg0, %arg1, %c0_i32 : i32, i32, i32
  }
}

</mosaic_0001>

<llo_original>
// kernel: tpu_custom_call.1
$region0: #{tpu_custom_call.1}
  #allocation0 [shape = 'u32[]', space=smem, size = 0x4, offset = 0x4, fixed_abs, tag = 'smem constant byte address 0x4 - core index']
  #allocation1 [shape = 'u32[72,128]{1,0:T(1,128)}', space=vmem, size = 0x9000, scoped, tag = 'internal scratch']
  %s0 = inlined_call_operand.vmem [shape: bf16[2,256,32], index: 0, kind: input, shape index: {}]
  %s1 = inlined_call_operand.vmem [shape: bf16[32,64], index: 1, kind: input, shape index: {}]
  %s2 = inlined_call_operand.vmem [shape: f32[1,64], index: 2, kind: input, shape index: {}]
  %s3 = inlined_call_operand.vmem [shape: bf16[2,256,64], index: 3, kind: output, shape index: {}]
  %s4 = sld [smem:[#allocation0]]
  $region45: #{tpu_custom_call.1} parent=0
    _
  %s6 = ssub.s32 1, %s4
  %s7 = scalar_select 0, %s6, %s4
  loop: start=0, step=1, limit=4
  $region2: #{tpu_custom_call.1} parent=0 // loop_pre_header
    _
  $region3: #{tpu_custom_call.1} parent=0 // loop_header
    %s9 = sphi 0, %s13
    %p10 = scmp.ge.s32.totalorder %s9, 4
    %s16 = sphi 0, %s28
    %s17 = sphi 0, %s24
    %s18 = sphi 0, %s16
    %s19 = sphi 0, %s17
    %s20 = sphi 0, %s18
    %s21 = sphi 0, %s19
    %s33 = sphi 0, %s35
    %s36 = sphi 0, %s33
    %s37 = sphi 0, %s36
    %s53 = sphi 0, %s37
    %s57 = sphi 0, %s57
    %s59 = sphi 0, %s57
    %s60 = sphi 0, %s59
    %s74 = sphi 0, %s60
    %s78 = sphi 0, %s78
    %s80 = sphi 0, %s78
    %s81 = sphi 0, %s80
    %s95 = sphi 0, %s81
    %s103 = sphi 0, %s105
    %s106 = sphi 0, %s103
    %s107 = sphi 0, %s106
    %s123 = sphi 0, %s107
  $region4: #{tpu_custom_call.1} parent=0 // loop_header_branch
    %12 = sbr.rel (%p10) target = $region8
  $region5: #{tpu_custom_call.1} parent=0 // loop_body
    %s14 = ssub.s32 %s9, 1
    %s15 = ssub.s32 %s9, 2
    %s22 = sadd.s32 1, %s17
    %p23 = scmp.ge.s32.totalorder %s22, 1
    %s24 = scalar_select %p23, 0, %s22
    %s25 = sadd.s32 1, %s16
    %s26 = scalar_select %p23, %s25, %s16
    %p27 = scmp.ge.s32.totalorder %s26, 2
    %s28 = scalar_select %p27, 0, %s26
    %s29 = ssub.s32 %s16, %s28
    %s30 = ssub.s32 %s17, %s24
    %s31 = sor.u32 %s29, %s30
    %p32 = scmp.eq.s32.totalorder %s31, 0
    %s34 = sadd.s32 %s33, 1
    %s35 = scalar_select %p32, %s33, %s34
    %p38 = pneg %p32
    %p39 = scmp.eq.s32.totalorder %s9, 1
    %p40 = por %p38, %p39
    %p41 = scmp.ne.s32.totalorder %s33, %s36
    %p42 = scmp.eq.s32.totalorder %s9, 0
    %p43 = por %p41, %p42
    %p44 = scmp.ne.s32.totalorder %s33, %s36
    %p45 = scmp.eq.s32.totalorder %s14, 1
    %p46 = por %p44, %p45
    %p47 = scmp.ne.s32.totalorder %s36, %s37
    %p48 = scmp.eq.s32.totalorder %s14, 0
    %p49 = por %p47, %p48
    %p50 = scmp.ne.s32.totalorder %s36, %s37
    %p51 = scmp.eq.s32.totalorder %s15, 1
    %p52 = por %p50, %p51
    %p54 = scmp.ne.s32.totalorder %s37, %s53
    %p55 = scmp.eq.s32.totalorder %s15, 0
    %p56 = por %p54, %p55
    %s58 = sadd.s32 %s57, 1
    %p61 = scmp.eq.s32.totalorder %s9, 1
    %p62 = scmp.ne.s32.totalorder %s57, %s59
    %p63 = scmp.eq.s32.totalorder %s9, 0
    %p64 = por %p62, %p63
    %p65 = scmp.ne.s32.totalorder %s57, %s59
    %p66 = scmp.eq.s32.totalorder %s14, 1
    %p67 = por %p65, %p66
    %p68 = scmp.ne.s32.totalorder %s59, %s60
    %p69 = scmp.eq.s32.totalorder %s14, 0
    %p70 = por %p68, %p69
    %p71 = scmp.ne.s32.totalorder %s59, %s60
    %p72 = scmp.eq.s32.totalorder %s15, 1
    %p73 = por %p71, %p72
    %p75 = scmp.ne.s32.totalorder %s60, %s74
    %p76 = scmp.eq.s32.totalorder %s15, 0
    %p77 = por %p75, %p76
    %s79 = sadd.s32 %s78, 1
    %p82 = scmp.eq.s32.totalorder %s9, 1
    %p83 = scmp.ne.s32.totalorder %s78, %s80
    %p84 = scmp.eq.s32.totalorder %s9, 0
    %p85 = por %p83, %p84
    %p86 = scmp.ne.s32.totalorder %s78, %s80
    %p87 = scmp.eq.s32.totalorder %s14, 1
    %p88 = por %p86, %p87
    %p89 = scmp.ne.s32.totalorder %s80, %s81
    %p90 = scmp.eq.s32.totalorder %s14, 0
    %p91 = por %p89, %p90
    %p92 = scmp.ne.s32.totalorder %s80, %s81
    %p93 = scmp.eq.s32.totalorder %s15, 1
    %p94 = por %p92, %p93
    %p96 = scmp.ne.s32.totalorder %s81, %s95
    %p97 = scmp.eq.s32.totalorder %s15, 0
    %p98 = por %p96, %p97
    %s99 = ssub.s32 %s16, %s28
    %s100 = ssub.s32 %s17, %s24
    %s101 = sor.u32 %s99, %s100
    %p102 = scmp.eq.s32.totalorder %s101, 0
    %s104 = sadd.s32 %s103, 1
    %s105 = scalar_select %p102, %s103, %s104
    %p108 = pneg %p102
    %p109 = scmp.eq.s32.totalorder %s9, 1
    %p110 = por %p108, %p109
    %p111 = scmp.ne.s32.totalorder %s103, %s106
    %p112 = scmp.eq.s32.totalorder %s9, 0
    %p113 = por %p111, %p112
    %p114 = scmp.ne.s32.totalorder %s103, %s106
    %p115 = scmp.eq.s32.totalorder %s14, 1
    %p116 = por %p114, %p115
    %p117 = scmp.ne.s32.totalorder %s106, %s107
    %p118 = scmp.eq.s32.totalorder %s14, 0
    %p119 = por %p117, %p118
    %p120 = scmp.ne.s32.totalorder %s106, %s107
    %p121 = scmp.eq.s32.totalorder %s15, 1
    %p122 = por %p120, %p121
    %p124 = scmp.ne.s32.totalorder %s107, %s123
    %p125 = scmp.eq.s32.totalorder %s15, 0
    %p126 = por %p124, %p125
    %p127 = scmp.le.s32.totalorder 1, %s9
    %p128 = scmp.lt.s32.totalorder %s9, 3
    %p129 = pnand %p127, %p128
    %p130 = pneg %p129
    // Predicated region
    $region9: #{tpu_custom_call.1} parent=5 // pred_check
      _
    $region10: #{tpu_custom_call.1} parent=5 // pred_check_branch
      %132 = sbr.rel (%p129) target = $region12
    $region11: #{tpu_custom_call.1} parent=5 // pred_region
      %s133 = ssub.s32 %s9, 1
      // Predicated region
      $region13: #{tpu_custom_call.1} parent=11 // pred_check
        %p134 = pneg %p70
      $region14: #{tpu_custom_call.1} parent=11 // pred_check_branch
        %136 = sbr.rel (%p134) target = $region16
      $region15: #{tpu_custom_call.1} parent=11 // pred_region
        _
      $region16: #{tpu_custom_call.1} parent=11 // pred_fallthru
        _
      // Predicated region
      $region17: #{tpu_custom_call.1} parent=11 // pred_check
        %p137 = pneg %p91
      $region18: #{tpu_custom_call.1} parent=11 // pred_check_branch
        %139 = sbr.rel (%p137) target = $region20
      $region19: #{tpu_custom_call.1} parent=11 // pred_region
        _
      $region20: #{tpu_custom_call.1} parent=11 // pred_fallthru
        _
    $region12: #{tpu_custom_call.1} parent=5 // pred_fallthru
      _
    %p140 = scmp.lt.s32.totalorder %s9, 2
    // Predicated region
    $region21: #{tpu_custom_call.1} parent=5 // pred_check
      %p141 = pneg %p140
    $region22: #{tpu_custom_call.1} parent=5 // pred_check_branch
      %143 = sbr.rel (%p141) target = $region24
    $region23: #{tpu_custom_call.1} parent=5 // pred_region
      // Predicated region
      $region25: #{tpu_custom_call.1} parent=23 // pred_check
        %p144 = pneg %p43
      $region26: #{tpu_custom_call.1} parent=23 // pred_check_branch
        %146 = sbr.rel (%p144) target = $region28
      $region27: #{tpu_custom_call.1} parent=23 // pred_region
        %s147 = smul.u32 32, %s17
        %p148 = scmp.lt.s32.totalorder %s16, 1
        %s149 = scalar_select %p148, %s16, 1
        %p150 = scmp.lt.s32.totalorder %s147, 31
        %s151 = scalar_select %p150, %s147, 31
        %s152 = smul.addr %s149, 32
        %s153 = sadd.s32 %s151, %s152
        %s154 = smul.addr %s153, 4
        %s155 = scalar_lea.vmem %s0, %s154
        %s156 = smul.u32 32, %s17
      $region28: #{tpu_custom_call.1} parent=23 // pred_fallthru
        _
    $region24: #{tpu_custom_call.1} parent=5 // pred_fallthru
      _
    %p157 = scmp.le.s32.totalorder 1, %s9
    %p158 = scmp.lt.s32.totalorder %s9, 3
    %p159 = pnand %p157, %p158
    %p160 = pneg %p159
    // Predicated region
    $region29: #{tpu_custom_call.1} parent=5 // pred_check
      _
    $region30: #{tpu_custom_call.1} parent=5 // pred_check_branch
      %162 = sbr.rel (%p159) target = $region32
    $region31: #{tpu_custom_call.1} parent=5 // pred_region
      %s163 = ssub.s32 %s9, 1
      %s164 = smul.u32 32, %s19
      %p165 = scmp.lt.s32.totalorder %s18, 1
      %s166 = scalar_select %p165, %s18, 1
      %p167 = scmp.lt.s32.totalorder %s164, 31
      %s168 = scalar_select %p167, %s164, 31
      %s169 = smul.addr %s166, 32
      %s170 = sadd.s32 %s168, %s169
      %s171 = smul.addr %s170, 4
      %s172 = scalar_lea.vmem %s0, %s171
      %p173 = pneg %p49
      %p174 = pneg %p46
      %p175 = pneg %p70
      %p176 = pneg %p67
      %p177 = pneg %p91
      %p178 = pneg %p88
      %p179 = pneg %p119
      %p180 = pneg %p116
      %s181 = smul.u32 32, %s19
      %p182 = scmp.lt.s32.totalorder %s18, 1
      %s183 = scalar_select %p182, %s18, 1
      %p184 = scmp.lt.s32.totalorder %s181, 31
      %s185 = scalar_select %p184, %s181, 31
      %s186 = smul.addr %s183, 32
      %s187 = sadd.s32 %s185, %s186
      %s188 = smul.addr %s187, 4
      %s189 = scalar_lea.vmem %s3, %s188
      %s190 = smul.u32 32, %s19
      %p191 = scmp.lt.s32.totalorder %s18, 1
      %s192 = scalar_select %p191, %s18, 1
      %p193 = scmp.lt.s32.totalorder %s190, 31
      %s194 = scalar_select %p193, %s190, 31
      %s195 = smul.addr %s192, 32
      %s196 = sadd.s32 %s194, %s195
      %s197 = smul.addr %s196, 4
      %s198 = scalar_lea.vmem %s0, %s197
      %s199 = smul.u32 32, %s19
      %s200 = smul.u32 32, %s19
      %p201 = scmp.lt.s32.totalorder %s18, 1
      %s202 = scalar_select %p201, %s18, 1
      %p203 = scmp.lt.s32.totalorder %s200, 31
      %s204 = scalar_select %p203, %s200, 31
      %s205 = smul.addr %s202, 32
      %s206 = sadd.s32 %s204, %s205
      %s207 = smul.addr %s206, 4
      %s208 = scalar_lea.vmem %s3, %s207
      %s209 = smul.u32 32, %s19
      %v211 = vld [vmem:[%s198] sm:$0xf]
      %v212 = vld [vmem:[%s198 + $0x4] sm:$0xf]
      %v213 = vld [vmem:[%s198 + $0x8] sm:$0xf]
      %v214 = vld [vmem:[%s198 + $0xc] sm:$0xf]
      %v215 = vld [vmem:[%s198 + $0x10] sm:$0xf]
      %v216 = vld [vmem:[%s198 + $0x14] sm:$0xf]
      %v217 = vld [vmem:[%s198 + $0x18] sm:$0xf]
      %v218 = vld [vmem:[%s198 + $0x1c] sm:$0xf]
      %v219 = vld [vmem:[%s198 + $0x20] sm:$0xf]
      %v220 = vld [vmem:[%s198 + $0x24] sm:$0xf]
      %v221 = vld [vmem:[%s198 + $0x28] sm:$0xf]
      %v222 = vld [vmem:[%s198 + $0x2c] sm:$0xf]
      %v223 = vld [vmem:[%s198 + $0x30] sm:$0xf]
      %v224 = vld [vmem:[%s198 + $0x34] sm:$0xf]
      %v225 = vld [vmem:[%s198 + $0x38] sm:$0xf]
      %v226 = vld [vmem:[%s198 + $0x3c] sm:$0xf]
      %v227 = vld [vmem:[%s198 + $0x40] sm:$0xf]
      %v228 = vld [vmem:[%s198 + $0x44] sm:$0xf]
      %v229 = vld [vmem:[%s198 + $0x48] sm:$0xf]
      %v230 = vld [vmem:[%s198 + $0x4c] sm:$0xf]
      %v231 = vld [vmem:[%s198 + $0x50] sm:$0xf]
      %v232 = vld [vmem:[%s198 + $0x54] sm:$0xf]
      %v233 = vld [vmem:[%s198 + $0x58] sm:$0xf]
      %v234 = vld [vmem:[%s198 + $0x5c] sm:$0xf]
      %v235 = vld [vmem:[%s198 + $0x60] sm:$0xf]
      %v236 = vld [vmem:[%s198 + $0x64] sm:$0xf]
      %v237 = vld [vmem:[%s198 + $0x68] sm:$0xf]
      %v238 = vld [vmem:[%s198 + $0x6c] sm:$0xf]
      %v239 = vld [vmem:[%s198 + $0x70] sm:$0xf]
      %v240 = vld [vmem:[%s198 + $0x74] sm:$0xf]
      %v241 = vld [vmem:[%s198 + $0x78] sm:$0xf]
      %v242 = vld [vmem:[%s198 + $0x7c] sm:$0xf]
      %v243 = vld [vmem:[%s1] sm:$0xf]
      %v244 = vld [vmem:[%s1 + $0x4] sm:$0xf]
      %v245 = vld [vmem:[%s1 + $0x8] sm:$0xf]
      %v246 = vld [vmem:[%s1 + $0xc] sm:$0xf]
      %v247 = vld [vmem:[%s2] sm:$0x1]
      %v249 = vperm.slane %v247, 0
      %v283 = vunpack.c.l.b16 %v211
      %v284 = vunpack.c.l.b16 %v212
      %v285 = vunpack.c.l.b16 %v213
      %v286 = vunpack.c.l.b16 %v214
      %v287 = vunpack.c.l.b16 %v215
      %v288 = vunpack.c.l.b16 %v216
      %v289 = vunpack.c.l.b16 %v217
      %v290 = vunpack.c.l.b16 %v218
      %v291 = vunpack.c.l.b16 %v219
      %v292 = vunpack.c.l.b16 %v220
      %v293 = vunpack.c.l.b16 %v221
      %v294 = vunpack.c.l.b16 %v222
      %v295 = vunpack.c.l.b16 %v223
      %v296 = vunpack.c.l.b16 %v224
      %v297 = vunpack.c.l.b16 %v225
      %v298 = vunpack.c.l.b16 %v226
      %v299 = vunpack.c.l.b16 %v227
      %v300 = vunpack.c.l.b16 %v228
      %v301 = vunpack.c.l.b16 %v229
      %v302 = vunpack.c.l.b16 %v230
      %v303 = vunpack.c.l.b16 %v231
      %v304 = vunpack.c.l.b16 %v232
      %v305 = vunpack.c.l.b16 %v233
      %v306 = vunpack.c.l.b16 %v234
      %v307 = vunpack.c.l.b16 %v235
      %v308 = vunpack.c.l.b16 %v236
      %v309 = vunpack.c.l.b16 %v237
      %v310 = vunpack.c.l.b16 %v238
      %v311 = vunpack.c.l.b16 %v239
      %v312 = vunpack.c.l.b16 %v240
      %v313 = vunpack.c.l.b16 %v241
      %v314 = vunpack.c.l.b16 %v242
      %v315 = vpack.c.b16 %v284, %v283
      %v316 = vpack.c.b16 %v286, %v285
      %v317 = vpack.c.b16 %v288, %v287
      %v318 = vpack.c.b16 %v290, %v289
      %v319 = vpack.c.b16 %v292, %v291
      %v320 = vpack.c.b16 %v294, %v293
      %v321 = vpack.c.b16 %v296, %v295
      %v322 = vpack.c.b16 %v298, %v297
      %v323 = vpack.c.b16 %v300, %v299
      %v324 = vpack.c.b16 %v302, %v301
      %v325 = vpack.c.b16 %v304, %v303
      %v326 = vpack.c.b16 %v306, %v305
      %v327 = vpack.c.b16 %v308, %v307
      %v328 = vpack.c.b16 %v310, %v309
      %v329 = vpack.c.b16 %v312, %v311
      %v330 = vpack.c.b16 %v314, %v313
      %v335 = vunpack.c.l.b16 %v243
      %v336 = vunpack.c.l.b16 %v244
      %v337 = vunpack.c.l.b16 %v245
      %v338 = vunpack.c.l.b16 %v246
      %v339 = vpack.c.b16 %v336, %v335
      %v340 = vpack.c.b16 %v338, %v337
      %vm343 = vcmask 261120
      %v345 = vsel %vm343, %v315, 0
      %v348 = vsel %vm343, %v316, 0
      %v351 = vsel %vm343, %v317, 0
      %v354 = vsel %vm343, %v318, 0
      %v357 = vsel %vm343, %v319, 0
      %v360 = vsel %vm343, %v320, 0
      %v363 = vsel %vm343, %v321, 0
      %v366 = vsel %vm343, %v322, 0
      %v369 = vsel %vm343, %v323, 0
      %v372 = vsel %vm343, %v324, 0
      %v375 = vsel %vm343, %v325, 0
      %v378 = vsel %vm343, %v326, 0
      %v381 = vsel %vm343, %v327, 0
      %v384 = vsel %vm343, %v328, 0
      %v387 = vsel %vm343, %v329, 0
      %v390 = vsel %vm343, %v330, 0
      %392 = vmatpush.bf16.msra.mxu0 0
      %393 = vmatpush.bf16.msra.mxu0 0
      %394 = vmatpush.bf16.msra.mxu0 0
      %395 = vmatpush.bf16.msra.mxu0 0
      %396 = vmatpush.bf16.msra.mxu0 0
      %397 = vmatpush.bf16.msra.mxu0 0
      %398 = vmatpush.bf16.msra.mxu0 %v340
      %399 = vmatpush.bf16.msra.mxu0 %v339
      %400 = vmatmul.bf16.gmra.mxu0 %v345
      %v401 = vpop.f32.mrf.mxu0
      %v402 = vadd.f32 %v249, %v401
      %v403 = vpop.f32.mrf.mxu0
      %v404 = vadd.f32 %v249, %v403
      %405 = vmatmul.bf16.gmra.mxu0 %v348
      %v406 = vpop.f32.mrf.mxu0
      %v407 = vadd.f32 %v249, %v406
      %v408 = vpop.f32.mrf.mxu0
      %v409 = vadd.f32 %v249, %v408
      %410 = vmatmul.bf16.gmra.mxu0 %v351
      %v411 = vpop.f32.mrf.mxu0
      %v412 = vadd.f32 %v249, %v411
      %v413 = vpop.f32.mrf.mxu0
      %v414 = vadd.f32 %v249, %v413
      %415 = vmatmul.bf16.gmra.mxu0 %v354
      %v416 = vpop.f32.mrf.mxu0
      %v417 = vadd.f32 %v249, %v416
      %v418 = vpop.f32.mrf.mxu0
      %v419 = vadd.f32 %v249, %v418
      %420 = vmatmul.bf16.gmra.mxu0 %v357
      %v421 = vpop.f32.mrf.mxu0
      %v422 = vadd.f32 %v249, %v421
      %v423 = vpop.f32.mrf.mxu0
      %v424 = vadd.f32 %v249, %v423
      %425 = vmatmul.bf16.gmra.mxu0 %v360
      %v426 = vpop.f32.mrf.mxu0
      %v427 = vadd.f32 %v249, %v426
      %v428 = vpop.f32.mrf.mxu0
      %v429 = vadd.f32 %v249, %v428
      %430 = vmatmul.bf16.gmra.mxu0 %v363
      %v431 = vpop.f32.mrf.mxu0
      %v432 = vadd.f32 %v249, %v431
      %v433 = vpop.f32.mrf.mxu0
      %v434 = vadd.f32 %v249, %v433
      %435 = vmatmul.bf16.gmra.mxu0 %v366
      %v436 = vpop.f32.mrf.mxu0
      %v437 = vadd.f32 %v249, %v436
      %v438 = vpop.f32.mrf.mxu0
      %v439 = vadd.f32 %v249, %v438
      %440 = vmatmul.bf16.gmra.mxu0 %v369
      %v441 = vpop.f32.mrf.mxu0
      %v442 = vadd.f32 %v249, %v441
      %v443 = vpop.f32.mrf.mxu0
      %v444 = vadd.f32 %v249, %v443
      %445 = vmatmul.bf16.gmra.mxu0 %v372
      %v446 = vpop.f32.mrf.mxu0
      %v447 = vadd.f32 %v249, %v446
      %v448 = vpop.f32.mrf.mxu0
      %v449 = vadd.f32 %v249, %v448
      %450 = vmatmul.bf16.gmra.mxu0 %v375
      %v451 = vpop.f32.mrf.mxu0
      %v452 = vadd.f32 %v249, %v451
      %v453 = vpop.f32.mrf.mxu0
      %v454 = vadd.f32 %v249, %v453
      %455 = vmatmul.bf16.gmra.mxu0 %v378
      %v456 = vpop.f32.mrf.mxu0
      %v457 = vadd.f32 %v249, %v456
      %v458 = vpop.f32.mrf.mxu0
      %v459 = vadd.f32 %v249, %v458
      %460 = vmatmul.bf16.gmra.mxu0 %v381
      %v461 = vpop.f32.mrf.mxu0
      %v462 = vadd.f32 %v249, %v461
      %v463 = vpop.f32.mrf.mxu0
      %v464 = vadd.f32 %v249, %v463
      %465 = vmatmul.bf16.gmra.mxu0 %v384
      %v466 = vpop.f32.mrf.mxu0
      %v467 = vadd.f32 %v249, %v466
      %v468 = vpop.f32.mrf.mxu0
      %v469 = vadd.f32 %v249, %v468
      %470 = vmatmul.bf16.gmra.mxu0 %v387
      %v471 = vpop.f32.mrf.mxu0
      %v472 = vadd.f32 %v249, %v471
      %v473 = vpop.f32.mrf.mxu0
      %v474 = vadd.f32 %v249, %v473
      %475 = vmatmul.bf16.gmra.mxu0 %v390
      %v476 = vpop.f32.mrf.mxu0
      %v477 = vadd.f32 %v249, %v476
      %v478 = vpop.f32.mrf.mxu0
      %v479 = vadd.f32 %v249, %v478
      %480 = vdwg.mxu0
      %v481 = vmax.f32 %v402, 0.0
      %v482 = vmax.f32 %v404, 0.0
      %v483 = vmax.f32 %v407, 0.0
      %v484 = vmax.f32 %v409, 0.0
      %v485 = vmax.f32 %v412, 0.0
      %v486 = vmax.f32 %v414, 0.0
      %v487 = vmax.f32 %v417, 0.0
      %v488 = vmax.f32 %v419, 0.0
      %v489 = vmax.f32 %v422, 0.0
      %v490 = vmax.f32 %v424, 0.0
      %v491 = vmax.f32 %v427, 0.0
      %v492 = vmax.f32 %v429, 0.0
      %v493 = vmax.f32 %v432, 0.0
      %v494 = vmax.f32 %v434, 0.0
      %v495 = vmax.f32 %v437, 0.0
      %v496 = vmax.f32 %v439, 0.0
      %v497 = vmax.f32 %v442, 0.0
      %v498 = vmax.f32 %v444, 0.0
      %v499 = vmax.f32 %v447, 0.0
      %v500 = vmax.f32 %v449, 0.0
      %v501 = vmax.f32 %v452, 0.0
      %v502 = vmax.f32 %v454, 0.0
      %v503 = vmax.f32 %v457, 0.0
      %v504 = vmax.f32 %v459, 0.0
      %v505 = vmax.f32 %v462, 0.0
      %v506 = vmax.f32 %v464, 0.0
      %v507 = vmax.f32 %v467, 0.0
      %v508 = vmax.f32 %v469, 0.0
      %v509 = vmax.f32 %v472, 0.0
      %v510 = vmax.f32 %v474, 0.0
      %v511 = vmax.f32 %v477, 0.0
      %v512 = vmax.f32 %v479, 0.0
      %v513 = vpack.c.bf16 %v481, %v481
      %v514 = vpack.c.bf16 %v482, %v482
      %v515 = vpack.c.bf16 %v483, %v483
      %v516 = vpack.c.bf16 %v484, %v484
      %v517 = vpack.c.bf16 %v485, %v485
      %v518 = vpack.c.bf16 %v486, %v486
      %v519 = vpack.c.bf16 %v487, %v487
      %v520 = vpack.c.bf16 %v488, %v488
      %v521 = vpack.c.bf16 %v489, %v489
      %v522 = vpack.c.bf16 %v490, %v490
      %v523 = vpack.c.bf16 %v491, %v491
      %v524 = vpack.c.bf16 %v492, %v492
      %v525 = vpack.c.bf16 %v493, %v493
      %v526 = vpack.c.bf16 %v494, %v494
      %v527 = vpack.c.bf16 %v495, %v495
      %v528 = vpack.c.bf16 %v496, %v496
      %v529 = vpack.c.bf16 %v497, %v497
      %v530 = vpack.c.bf16 %v498, %v498
      %v531 = vpack.c.bf16 %v499, %v499
      %v532 = vpack.c.bf16 %v500, %v500
      %v533 = vpack.c.bf16 %v501, %v501
      %v534 = vpack.c.bf16 %v502, %v502
      %v535 = vpack.c.bf16 %v503, %v503
      %v536 = vpack.c.bf16 %v504, %v504
      %v537 = vpack.c.bf16 %v505, %v505
      %v538 = vpack.c.bf16 %v506, %v506
      %v539 = vpack.c.bf16 %v507, %v507
      %v540 = vpack.c.bf16 %v508, %v508
      %v541 = vpack.c.bf16 %v509, %v509
      %v542 = vpack.c.bf16 %v510, %v510
      %v543 = vpack.c.bf16 %v511, %v511
      %v544 = vpack.c.bf16 %v512, %v512
      %vm545 = vcmask 519168
      %546 = vst.msk [vmem:[%s208] sm:$0xf] %vm545, %v513
      %547 = vst.msk [vmem:[%s208 + $0x4] sm:$0xf] %vm545, %v514
      %548 = vst.msk [vmem:[%s208 + $0x8] sm:$0xf] %vm545, %v515
      %549 = vst.msk [vmem:[%s208 + $0xc] sm:$0xf] %vm545, %v516
      %550 = vst.msk [vmem:[%s208 + $0x10] sm:$0xf] %vm545, %v517
      %551 = vst.msk [vmem:[%s208 + $0x14] sm:$0xf] %vm545, %v518
      %552 = vst.msk [vmem:[%s208 + $0x18] sm:$0xf] %vm545, %v519
      %553 = vst.msk [vmem:[%s208 + $0x1c] sm:$0xf] %vm545, %v520
      %554 = vst.msk [vmem:[%s208 + $0x20] sm:$0xf] %vm545, %v521
      %555 = vst.msk [vmem:[%s208 + $0x24] sm:$0xf] %vm545, %v522
      %556 = vst.msk [vmem:[%s208 + $0x28] sm:$0xf] %vm545, %v523
      %557 = vst.msk [vmem:[%s208 + $0x2c] sm:$0xf] %vm545, %v524
      %558 = vst.msk [vmem:[%s208 + $0x30] sm:$0xf] %vm545, %v525
      %559 = vst.msk [vmem:[%s208 + $0x34] sm:$0xf] %vm545, %v526
      %560 = vst.msk [vmem:[%s208 + $0x38] sm:$0xf] %vm545, %v527
      %561 = vst.msk [vmem:[%s208 + $0x3c] sm:$0xf] %vm545, %v528
      %562 = vst.msk [vmem:[%s208 + $0x40] sm:$0xf] %vm545, %v529
      %563 = vst.msk [vmem:[%s208 + $0x44] sm:$0xf] %vm545, %v530
      %564 = vst.msk [vmem:[%s208 + $0x48] sm:$0xf] %vm545, %v531
      %565 = vst.msk [vmem:[%s208 + $0x4c] sm:$0xf] %vm545, %v532
      %566 = vst.msk [vmem:[%s208 + $0x50] sm:$0xf] %vm545, %v533
      %567 = vst.msk [vmem:[%s208 + $0x54] sm:$0xf] %vm545, %v534
      %568 = vst.msk [vmem:[%s208 + $0x58] sm:$0xf] %vm545, %v535
      %569 = vst.msk [vmem:[%s208 + $0x5c] sm:$0xf] %vm545, %v536
      %570 = vst.msk [vmem:[%s208 + $0x60] sm:$0xf] %vm545, %v537
      %571 = vst.msk [vmem:[%s208 + $0x64] sm:$0xf] %vm545, %v538
      %572 = vst.msk [vmem:[%s208 + $0x68] sm:$0xf] %vm545, %v539
      %573 = vst.msk [vmem:[%s208 + $0x6c] sm:$0xf] %vm545, %v540
      %574 = vst.msk [vmem:[%s208 + $0x70] sm:$0xf] %vm545, %v541
      %575 = vst.msk [vmem:[%s208 + $0x74] sm:$0xf] %vm545, %v542
      %576 = vst.msk [vmem:[%s208 + $0x78] sm:$0xf] %vm545, %v543
      %577 = vst.msk [vmem:[%s208 + $0x7c] sm:$0xf] %vm545, %v544
      %s578 = smul.u32 32, %s19
      %p579 = scmp.lt.s32.totalorder %s18, 1
      %s580 = scalar_select %p579, %s18, 1
      %p581 = scmp.lt.s32.totalorder %s578, 31
      %s582 = scalar_select %p581, %s578, 31
      %s583 = smul.addr %s580, 32
      %s584 = sadd.s32 %s582, %s583
      %s585 = smul.addr %s584, 4
      %s586 = scalar_lea.vmem %s3, %s585
      // Predicated region
      $region33: #{tpu_custom_call.1} parent=31 // pred_check
        %p587 = pneg %p116
      $region34: #{tpu_custom_call.1} parent=31 // pred_check_branch
        %589 = sbr.rel (%p587) target = $region36
      $region35: #{tpu_custom_call.1} parent=31 // pred_region
        %s590 = smul.u32 32, %s19
      $region36: #{tpu_custom_call.1} parent=31 // pred_fallthru
        _
    $region32: #{tpu_custom_call.1} parent=5 // pred_fallthru
      _
    %p591 = scmp.le.s32.totalorder 2, %s9
    // Predicated region
    $region37: #{tpu_custom_call.1} parent=5 // pred_check
      %p592 = pneg %p591
    $region38: #{tpu_custom_call.1} parent=5 // pred_check_branch
      %594 = sbr.rel (%p592) target = $region40
    $region39: #{tpu_custom_call.1} parent=5 // pred_region
      %s595 = ssub.s32 %s9, 2
      // Predicated region
      $region41: #{tpu_custom_call.1} parent=39 // pred_check
        %p596 = pneg %p122
      $region42: #{tpu_custom_call.1} parent=39 // pred_check_branch
        %598 = sbr.rel (%p596) target = $region44
      $region43: #{tpu_custom_call.1} parent=39 // pred_region
        %s599 = smul.u32 32, %s21
        %p600 = scmp.lt.s32.totalorder %s20, 1
        %s601 = scalar_select %p600, %s20, 1
        %p602 = scmp.lt.s32.totalorder %s599, 31
        %s603 = scalar_select %p602, %s599, 31
        %s604 = smul.addr %s601, 32
        %s605 = sadd.s32 %s603, %s604
        %s606 = smul.addr %s605, 4
        %s607 = scalar_lea.vmem %s3, %s606
      $region44: #{tpu_custom_call.1} parent=39 // pred_fallthru
        _
    $region40: #{tpu_custom_call.1} parent=5 // pred_fallthru
      _
  $region6: #{tpu_custom_call.1} parent=0 // loop_footer
    %s13 = sadd.s32 1, %s9
  $region7: #{tpu_custom_call.1} parent=0 // loop_footer_branch
    %8 = sbr.rel target = $region3
  $region8: #{tpu_custom_call.1} parent=0 // loop_exit
    _

</llo_original>
